<compile_context>
chip_gen: v6e
topology: v6e:2x2x1
jax: 0.10.0
libtpu: 0.0.40
codegen_flags: <defaults>
</compile_context>

<pallas_src>
import jax
import jax.numpy as jnp
from jax.experimental import pallas as pl
from jax.experimental.pallas import tpu as pltpu

_LANE = 128


def _template_bank_kernel(coef_ref, tmpl_ref, out_ref):
    """coef_ref: VMEM (1, T); tmpl_ref: VMEM (T, TILE_N); out_ref: VMEM (1, TILE_N).

    out = coef @ tmpl == sum_t coef[t] * tmpl[t, :]
    Native-dtype operands on the MXU, f32 accumulation, cast back on store.
    """
    out_ref[...] = jnp.dot(
        coef_ref[...], tmpl_ref[...], preferred_element_type=jnp.float32
    ).astype(out_ref.dtype)


def _vmem_capacity_bytes():
    try:
        return int(pltpu.get_tpu_info().vmem_capacity_bytes)
    except Exception:
        return 128 * 1024 * 1024  # v5e/v6e physical VMEM as a safe default


def _pick_tile_lanes(num_templates, itemsize, n, vmem_bytes):
    """Lane-dense tile width (multiple of 128) for the flattened feature axis.

    Targets ~1/16 of physical VMEM per (T, tile_n) template tile, clamped to
    [2 MiB, 8 MiB]: v5e/v6e (128 MiB) -> 8 MiB tiles, v7x (64 MiB) -> 4 MiB tiles.
    Double-buffered input + output then fits comfortably on every generation
    while keeping the streaming reduction at the big-tile HBM roofline.
    """
    n_lanes = pl.cdiv(n, _LANE) * _LANE
    target_tile_bytes = max(2 * 1024 * 1024, min(8 * 1024 * 1024, vmem_bytes // 16))
    row_bytes = max(1, num_templates * itemsize)
    tile_lanes = max(_LANE, (target_tile_bytes // row_bytes) // _LANE * _LANE)
    tile_lanes = min(tile_lanes, n_lanes)
    # Re-balance tiles across the grid so steps are even-sized (keeps >= 2
    # comparable steps for v7x's two TensorCores whenever >1 tile is needed).
    num_tiles = pl.cdiv(n_lanes, tile_lanes)
    tile_lanes = pl.cdiv(pl.cdiv(n_lanes, num_tiles), _LANE) * _LANE
    return int(tile_lanes)


def template_bank_forward(coefficients, templates):
    """Pallas implementation of TemplateBank.forward.

    coefficients: (T, 1, 1, 1, 1)
    templates:    (T, C_in, C_out, K, K)
    returns:      (C_in, C_out, K, K) == (templates * coefficients).sum(0)
    """
    T, c_in, c_out, k, _ = templates.shape
    n = c_in * c_out * k * k
    itemsize = jnp.dtype(templates.dtype).itemsize

    # Lane-dense views; free reshapes, no padding copy in HBM.
    tmpl_2d = templates.reshape(T, n)
    coef_2d = coefficients.reshape(1, T).astype(templates.dtype)

    vmem_bytes = _vmem_capacity_bytes()
    tile_n = _pick_tile_lanes(T, itemsize, n, vmem_bytes)
    grid = (pl.cdiv(n, tile_n),)

    # Scoped-VMEM limit: 2x (T, tile_n) input + 2x (1, tile_n) output buffers plus
    # margin, at least 32 MiB (above v5e's 16 MiB default) and at most half of
    # physical VMEM (<= 32 MiB on v7x, <= 64 MiB on v5e/v6e).
    needed = 2 * T * itemsize * tile_n + 2 * itemsize * tile_n + (2 << 20)
    vmem_limit = int(min(vmem_bytes // 2, max(32 << 20, needed)))

    cost = pl.CostEstimate(
        flops=2 * T * n,
        transcendentals=0,
        bytes_accessed=(T + 1) * n * itemsize + T * itemsize,
    )

    out_2d = pl.pallas_call(
        _template_bank_kernel,
        out_shape=jax.ShapeDtypeStruct((1, n), templates.dtype),
        grid_spec=pltpu.PrefetchScalarGridSpec(
            num_scalar_prefetch=0,
            grid=grid,
            in_specs=[
                # coefficients: tiny, same block every step (stays resident in VMEM).
                pl.BlockSpec((1, T), lambda i: (0, 0)),
                # templates: lane-dense (T, tile_n) tile, pipelined over the grid;
                # the trailing partial block (if any) is masked by Pallas.
                pl.BlockSpec((T, tile_n), lambda i: (0, i)),
            ],
            out_specs=pl.BlockSpec((1, tile_n), lambda i: (0, i)),
        ),
        compiler_params=pltpu.CompilerParams(
            # Independent feature tiles -> shard across v7x's 2 TCs (no-op v5e/v6e).
            dimension_semantics=("parallel",),
            vmem_limit_bytes=vmem_limit,
        ),
        cost_estimate=cost,
    )(coef_2d, tmpl_2d)

    return out_2d.reshape(c_in, c_out, k, k)


if __name__ == "__main__":
    # Small, deterministic configuration consistent with the module's __init__.
    num_templates = 4
    input_channels = 4
    output_channels = 8
    kernel_size = 3

    key = jax.random.PRNGKey(0)
    k_tmpl, k_coef = jax.random.split(key)

    # Deterministic "parameter" init (PyTorch leaves templates uninitialized).
    templates = jax.random.normal(
        k_tmpl,
        (num_templates, input_channels, output_channels, kernel_size, kernel_size),
        dtype=jnp.float32,
    )
    coefficients = jax.random.normal(
        k_coef, (num_templates, 1, 1, 1, 1), dtype=jnp.float32
    )

    out = template_bank_forward(coefficients, templates)
    out = jax.block_until_ready(out)

    # Pure-JAX reference of the PyTorch forward: (templates * coefficients).sum(0)
    ref = (templates * coefficients).sum(axis=0)
    assert out.shape == (input_channels, output_channels, kernel_size, kernel_size)
    assert jnp.allclose(out, ref, atol=1e-5, rtol=1e-5)

    print("KERNEL_OK")
</pallas_src>

<mosaic_0001>
module attributes {stable_mosaic.version = 11 : i64} {
  func.func @_template_bank_kernel(%arg0: i32, %arg1: memref<1x4xf32, #tpu.memory_space<vmem>>, %arg2: memref<4x384xf32, #tpu.memory_space<vmem>>, %arg3: memref<1x384xf32, #tpu.memory_space<vmem>>) attributes {dimension_semantics = [#tpu.dimension_semantics<parallel>], iteration_bounds = array<i64: 1>, scalar_prefetch = 0 : i64, scratch_operands = 0 : i64, tpu.core_type = #tpu.core_type<tc>, window_params = [{pipeline_mode = #tpu.pipeline_mode<synchronous>, transform_indices = @transform_0, window_bounds = array<i64: 1, 4>}, {transform_indices = @transform_1, window_bounds = array<i64: 4, 384>}, {transform_indices = @transform_2, window_bounds = array<i64: 1, 384>}]} {
    %c0 = arith.constant 0 : index
    %c0_0 = arith.constant 0 : index
    %0 = vector.load %arg1[%c0, %c0_0] : memref<1x4xf32, #tpu.memory_space<vmem>>, vector<1x4xf32>
    %c0_1 = arith.constant 0 : index
    %c0_2 = arith.constant 0 : index
    %1 = vector.load %arg2[%c0_1, %c0_2] : memref<4x384xf32, #tpu.memory_space<vmem>>, vector<4x384xf32>
    %cst = arith.constant dense<0.000000e+00> : vector<1x384xf32>
    %2 = tpu.matmul %0, %1, %cst {dimension_numbers = #tpu.dot_dimension_numbers<[1], [0], [0], [1], [0, 0, 1, 1], [], []>} : vector<1x4xf32>, vector<4x384xf32>, vector<1x384xf32> -> vector<1x384xf32>
    %c0_3 = arith.constant 0 : index
    %c0_4 = arith.constant 0 : index
    %3 = vector.load %arg3[%c0_3, %c0_4] : memref<1x384xf32, #tpu.memory_space<vmem>>, vector<1x384xf32>
    tpu.vector_store %arg3[%c0_3, %c0_4], %2 {strides = array<i32>} : memref<1x384xf32, #tpu.memory_space<vmem>>, vector<1x384xf32>,
    return
  }
  func.func @transform_0(%arg0: i32) -> (i32, i32) {
    %c0_i32 = arith.constant 0 : i32
    %c0_i32_0 = arith.constant 0 : i32
    %c0_i32_1 = arith.constant 0 : i32
    return %c0_i32, %c0_i32_0 : i32, i32
  }
  func.func @transform_1(%arg0: i32) -> (i32, i32) {
    %c0_i32 = arith.constant 0 : i32
    %c0_i32_0 = arith.constant 0 : i32
    return %c0_i32, %arg0 : i32, i32
  }
  func.func @transform_2(%arg0: i32) -> (i32, i32) {
    %c0_i32 = arith.constant 0 : i32
    %c0_i32_0 = arith.constant 0 : i32
    return %c0_i32, %arg0 : i32, i32
  }
}

</mosaic_0001>

<llo_original>
// kernel: tpu_custom_call.1
$region0: #{tpu_custom_call.1}
  #allocation0 [shape = 'u32[]', space=smem, size = 0x4, offset = 0x4, fixed_abs, tag = 'smem constant byte address 0x4 - core index']
  #allocation1 [shape = 'u32[144,128]{1,0:T(1,128)}', space=vmem, size = 0x12000, scoped, tag = 'internal scratch']
  %s0 = inlined_call_operand.hbm [shape: f32[1,4], index: 0, kind: input, shape index: {}]
  %s1 = inlined_call_operand.hbm [shape: f32[4,288], index: 1, kind: input, shape index: {}]
  %s2 = inlined_call_operand.hbm [shape: f32[1,288], index: 2, kind: output, shape index: {}]
  %s3 = sld [smem:[#allocation0]]
  $region26: #{tpu_custom_call.1} parent=0
    _
  %s5 = ssub.s32 1, %s3
  %s6 = scalar_select 0, %s5, %s3
  $region1: #{tpu_custom_call.1} parent=0
    #allocation2 [shape = 'u8[512]{0}', space=vmem, size = 0x400, scoped, tag = 'input window, operand 0, single buffered']
    #allocation3 [shape = 's32[1]{0}', space=sflag, size = 0x4, scoped, tag = 'scoped memory for tpu_custom_call.1']
    #allocation4 [shape = 's32[1]{0}', space=sflag, size = 0x4, scoped, tag = 'scoped memory for tpu_custom_call.1']
    #allocation5 [shape = 'u8[6144]{0}', space=vmem, size = 0x1800, scoped, tag = 'input window, operand 1, single buffered']
    #allocation6 [shape = 's32[1]{0}', space=sflag, size = 0x4, scoped, tag = 'scoped memory for tpu_custom_call.1']
    #allocation7 [shape = 'u8[1536]{0}', space=vmem, size = 0x800, scoped, tag = 'output window, operand 0, single buffered']
    %7 = vsyncpa [#allocation3], 0
    %8 = vsyncpa [#allocation6], 0
    %9 = vsyncpa [#allocation4], 0
    // Predicated region
    $region2: #{tpu_custom_call.1} parent=1 // pred_check
      _
    $region3: #{tpu_custom_call.1} parent=1 // pred_check_branch
      %11 = sbr.rel (0) target = $region5
    $region4: #{tpu_custom_call.1} parent=1 // pred_region
      %s13 = ssub.s32 16, 16
      %14 = vsyncadd [#allocation3], %s13
      %s16 = sshll.u32 [#allocation2], 4
      %s17 = int_to_ptr.vmem [resolvable:$true] %s16
      %19 = dma.hbm_to_vmem [thread:$0]  %s0, 16, %s17, [#allocation3]
    $region5: #{tpu_custom_call.1} parent=1 // pred_fallthru
      _
    // Predicated region
    $region6: #{tpu_custom_call.1} parent=1 // pred_check
      _
    $region7: #{tpu_custom_call.1} parent=1 // pred_check_branch
      %21 = sbr.rel (0) target = $region9
    $region8: #{tpu_custom_call.1} parent=1 // pred_region
      %s23 = ssub.s32 192, 192
      %24 = vsyncadd [#allocation6], %s23
      %s26 = sshll.u32 [#allocation5], 4
      %s27 = int_to_ptr.vmem [resolvable:$true] %s26
      %29 = dma.hbm_to_vmem [thread:$0]  %s1, 192, %s27, [#allocation6]
    $region9: #{tpu_custom_call.1} parent=1 // pred_fallthru
      _
    // Predicated region
    $region10: #{tpu_custom_call.1} parent=1 // pred_check
      _
    $region11: #{tpu_custom_call.1} parent=1 // pred_check_branch
      %31 = sbr.rel (0) target = $region13
    $region12: #{tpu_custom_call.1} parent=1 // pred_region
      %32 = dma.done [#allocation3], 16
    $region13: #{tpu_custom_call.1} parent=1 // pred_fallthru
      _
    // Predicated region
    $region14: #{tpu_custom_call.1} parent=1 // pred_check
      _
    $region15: #{tpu_custom_call.1} parent=1 // pred_check_branch
      %34 = sbr.rel (0) target = $region17
    $region16: #{tpu_custom_call.1} parent=1 // pred_region
      %35 = dma.done [#allocation6], 192
    $region17: #{tpu_custom_call.1} parent=1 // pred_fallthru
      _
    %v36 = vld [vmem:[#allocation2] sm:$0x1]
    %v37 = vld [vmem:[#allocation5] sm:$0xff]
    %v38 = vld [vmem:[#allocation5 + $0x8] sm:$0xf]
    %v41 = vcombine.high %v37, %v37
    %vm42 = vcmask 31744
    %v44 = vsel %vm42, %v36, 0
    %vm46 = vcmask 1043456
    %v47 = vsel %vm46, %v37, 0
    %v49 = vsel %vm46, %v41, 0
    %v51 = vsel %vm46, %v38, 0
    %53 = vmatprep.subr.mxu0 0.0
    %54 = vmatpush1.msra.mxu0 0.0
    %55 = vmatprep.subr.mxu0 0.0
    %56 = vmatpush1.msra.mxu0 0.0
    %57 = vmatprep.subr.mxu0 0.0
    %58 = vmatpush1.msra.mxu0 0.0
    %59 = vmatprep.subr.mxu0 0.0
    %60 = vmatpush1.msra.mxu0 0.0
    %61 = vmatprep.subr.mxu0 0.0
    %62 = vmatpush1.msra.mxu0 0.0
    %63 = vmatprep.subr.mxu0 0.0
    %64 = vmatpush1.msra.mxu0 0.0
    %65 = vmatprep.subr.mxu0 0.0
    %66 = vmatpush1.msra.mxu0 0.0
    %67 = vmatprep.subr.mxu0 0.0
    %68 = vmatpush1.msra.mxu0 0.0
    %69 = vmatprep.subr.mxu0 0.0
    %70 = vmatpush1.msra.mxu0 0.0
    %71 = vmatprep.subr.mxu0 0.0
    %72 = vmatpush1.msra.mxu0 0.0
    %73 = vmatprep.subr.mxu0 0.0
    %74 = vmatpush1.msra.mxu0 0.0
    %75 = vmatprep.subr.mxu0 0.0
    %76 = vmatpush1.msra.mxu0 0.0
    %77 = vmatprep.subr.mxu0 0.0
    %78 = vmatpush1.msra.mxu0 0.0
    %79 = vmatprep.subr.mxu0 0.0
    %80 = vmatpush1.msra.mxu0 0.0
    %81 = vmatprep.subr.mxu0 0.0
    %82 = vmatpush1.msra.mxu0 0.0
    %83 = vmatprep.subr.mxu0 %v49
    %84 = vmatpush1.msra.mxu0 %v47
    %85 = vmatprep.subr.mxu0 0.0
    %86 = vmatpush2.msra.mxu0 0.0
    %87 = vmatprep.subr.mxu0 0.0
    %88 = vmatpush2.msra.mxu0 0.0
    %89 = vmatprep.subr.mxu0 0.0
    %90 = vmatpush2.msra.mxu0 0.0
    %91 = vmatprep.subr.mxu0 0.0
    %92 = vmatpush2.msra.mxu0 0.0
    %93 = vmatprep.subr.mxu0 0.0
    %94 = vmatpush2.msra.mxu0 0.0
    %95 = vmatprep.subr.mxu0 0.0
    %96 = vmatpush2.msra.mxu0 0.0
    %97 = vmatprep.subr.mxu0 0.0
    %98 = vmatpush2.msra.mxu0 0.0
    %99 = vmatprep.subr.mxu0 0.0
    %100 = vmatpush2.msra.mxu0 0.0
    %101 = vmatprep.subr.mxu0 0.0
    %102 = vmatpush2.msra.mxu0 0.0
    %103 = vmatprep.subr.mxu0 0.0
    %104 = vmatpush2.msra.mxu0 0.0
    %105 = vmatprep.subr.mxu0 0.0
    %106 = vmatpush2.msra.mxu0 0.0
    %107 = vmatprep.subr.mxu0 0.0
    %108 = vmatpush2.msra.mxu0 0.0
    %109 = vmatprep.subr.mxu0 0.0
    %110 = vmatpush2.msra.mxu0 0.0
    %111 = vmatprep.subr.mxu0 0.0
    %112 = vmatpush2.msra.mxu0 0.0
    %113 = vmatprep.subr.mxu0 0.0
    %114 = vmatpush2.msra.mxu0 0.0
    %115 = vmatprep.subr.mxu0 0.0
    %116 = vmatpush2.msra.mxu0 0.0
    %117 = vmatprep.mubr.f32.mxu0 0.0
    %118 = vmatmul.mubr.f32.gmra.mxu0 %v44
    %v119 = vpop.f32.mrf.mxu0
    %v120 = vadd.f32 0.0, %v119
    %v121 = vpop.f32.mrf.mxu0
    %v122 = vadd.f32 0.0, %v121
    %123 = vdwg.mxu0
    %124 = vmatprep.subr.mxu0 0.0
    %125 = vmatpush1.msra.mxu0 0.0
    %126 = vmatprep.subr.mxu0 0.0
    %127 = vmatpush1.msra.mxu0 0.0
    %128 = vmatprep.subr.mxu0 0.0
    %129 = vmatpush1.msra.mxu0 0.0
    %130 = vmatprep.subr.mxu0 0.0
    %131 = vmatpush1.msra.mxu0 0.0
    %132 = vmatprep.subr.mxu0 0.0
    %133 = vmatpush1.msra.mxu0 0.0
    %134 = vmatprep.subr.mxu0 0.0
    %135 = vmatpush1.msra.mxu0 0.0
    %136 = vmatprep.subr.mxu0 0.0
    %137 = vmatpush1.msra.mxu0 0.0
    %138 = vmatprep.subr.mxu0 0.0
    %139 = vmatpush1.msra.mxu0 0.0
    %140 = vmatprep.subr.mxu0 0.0
    %141 = vmatpush1.msra.mxu0 0.0
    %142 = vmatprep.subr.mxu0 0.0
    %143 = vmatpush1.msra.mxu0 0.0
    %144 = vmatprep.subr.mxu0 0.0
    %145 = vmatpush1.msra.mxu0 0.0
    %146 = vmatprep.subr.mxu0 0.0
    %147 = vmatpush1.msra.mxu0 0.0
    %148 = vmatprep.subr.mxu0 0.0
    %149 = vmatpush1.msra.mxu0 0.0
    %150 = vmatprep.subr.mxu0 0.0
    %151 = vmatpush1.msra.mxu0 0.0
    %152 = vmatprep.subr.mxu0 0.0
    %153 = vmatpush1.msra.mxu0 0.0
    %154 = vmatprep.subr.mxu0 0.0
    %155 = vmatpush1.msra.mxu0 %v51
    %156 = vmatprep.subr.mxu0 0.0
    %157 = vmatpush2.msra.mxu0 0.0
    %158 = vmatprep.subr.mxu0 0.0
    %159 = vmatpush2.msra.mxu0 0.0
    %160 = vmatprep.subr.mxu0 0.0
    %161 = vmatpush2.msra.mxu0 0.0
    %162 = vmatprep.subr.mxu0 0.0
    %163 = vmatpush2.msra.mxu0 0.0
    %164 = vmatprep.subr.mxu0 0.0
    %165 = vmatpush2.msra.mxu0 0.0
    %166 = vmatprep.subr.mxu0 0.0
    %167 = vmatpush2.msra.mxu0 0.0
    %168 = vmatprep.subr.mxu0 0.0
    %169 = vmatpush2.msra.mxu0 0.0
    %170 = vmatprep.subr.mxu0 0.0
    %171 = vmatpush2.msra.mxu0 0.0
    %172 = vmatprep.subr.mxu0 0.0
    %173 = vmatpush2.msra.mxu0 0.0
    %174 = vmatprep.subr.mxu0 0.0
    %175 = vmatpush2.msra.mxu0 0.0
    %176 = vmatprep.subr.mxu0 0.0
    %177 = vmatpush2.msra.mxu0 0.0
    %178 = vmatprep.subr.mxu0 0.0
    %179 = vmatpush2.msra.mxu0 0.0
    %180 = vmatprep.subr.mxu0 0.0
    %181 = vmatpush2.msra.mxu0 0.0
    %182 = vmatprep.subr.mxu0 0.0
    %183 = vmatpush2.msra.mxu0 0.0
    %184 = vmatprep.subr.mxu0 0.0
    %185 = vmatpush2.msra.mxu0 0.0
    %186 = vmatprep.subr.mxu0 0.0
    %187 = vmatpush2.msra.mxu0 0.0
    %188 = vmatprep.mubr.f32.mxu0 0.0
    %189 = vmatmul.mubr.f32.gmra.mxu0 %v44
    %v190 = vpop.f32.mrf.mxu0
    %v191 = vadd.f32 0.0, %v190
    %v192 = vpop.f32.mrf.mxu0
    %193 = vdwg.mxu0
    %v197 = vcombine.low %v120, %v122
    %v199 = vunpack.c.l.s4 1966171168
    %v200 = vunpack.c.0.s8 %v199
    %v201 = vlaneseq
    %v202 = vshrl.u32 %v201, 7
    %v203 = vsub.s32 %v200, %v202
    %v204 = vrot.slane %v197, %v203
    %v206 = vunpack.c.l.s4 1966171168
    %v207 = vunpack.c.0.s8 %v206
    %v208 = vlaneseq
    %v209 = vshrl.u32 %v208, 7
    %v210 = vsub.s32 %v207, %v209
    %v211 = vrot.slane %v191, %v210
    %v212 = vcombine.low %v204, %v211
    %v214 = vunpack.c.l.s4 1966171168
    %v215 = vunpack.c.0.s8 %v214
    %v216 = vlaneseq
    %v217 = vshrl.u32 %v216, 7
    %v218 = vsub.s32 %v215, %v217
    %v219 = vrot.slane %v212, %v218
    %v221 = vlaneseq
    %vm222 = vcmp.ge.s32.totalorder %v221, 0
    %vm223 = vcmp.lt.s32.totalorder %v221, 384
    %vm224 = vmand %vm222, %vm223
    %225 = vst.msk [vmem:[#allocation7] sm:$0x7] %vm224, %v219
    // Predicated region
    $region18: #{tpu_custom_call.1} parent=1 // pred_check
      _
    $region19: #{tpu_custom_call.1} parent=1 // pred_check_branch
      %227 = sbr.rel (0) target = $region21
    $region20: #{tpu_custom_call.1} parent=1 // pred_region
      %s229 = ssub.s32 48, 48
      %230 = vsyncadd [#allocation4], %s229
      %s232 = sshll.u32 [#allocation7], 4
      %s233 = int_to_ptr.vmem [resolvable:$true] %s232
      %235 = dma.vmem_to_hbm [thread:$0]  %s233, 48, %s2, [#allocation4]
    $region21: #{tpu_custom_call.1} parent=1 // pred_fallthru
      _
    // Predicated region
    $region22: #{tpu_custom_call.1} parent=1 // pred_check
      _
    $region23: #{tpu_custom_call.1} parent=1 // pred_check_branch
      %237 = sbr.rel (0) target = $region25
    $region24: #{tpu_custom_call.1} parent=1 // pred_region
      %238 = dma.done [#allocation4], 48
    $region25: #{tpu_custom_call.1} parent=1 // pred_fallthru
      _
    %239 = vsyncpa [#allocation3], 1
    %240 = vsyncpa [#allocation6], 1
    %241 = vsyncpa [#allocation4], 1

</llo_original>
